<compile_context>
chip_gen: v6e
topology: v6e:2x2x1
jax: 0.10.0
libtpu: 0.0.40
codegen_flags: <defaults>
</compile_context>

<pallas_src>
import functools

import jax
import jax.numpy as jnp
from jax.experimental import pallas as pl
from jax.experimental.pallas import tpu as pltpu


def _round_up(x, m):
    return (x + m - 1) // m * m


def _enc_dec_kernel(src_emb_ref,          # (Bt, S_pad, H_pad) bf16 VMEM
                    tgt_emb_ref,          # (Bt, Tt,   H_pad)  bf16 VMEM
                    bias_ref,             # (Bt, 1,    S_pad)  f32  VMEM (src_len mask)
                    w_enc_ref,            # (H_pad, H_pad)     bf16 VMEM
                    w_dec_ref,            # (H_pad, H_pad)     bf16 VMEM
                    w_ctx_ref,            # (H_pad, H_pad)     bf16 VMEM
                    out_ref,              # (Bt, Tt, H_pad)    bf16 VMEM
                    attn_ref,             # (Bt, Tt, S_pad)    bf16 VMEM
                    enc_scratch,          # (Bt, S_pad, H_pad) bf16 VMEM scratch (persists)
                    *, hidden, bf16_softmax):
    bt, s_pad, h_pad = src_emb_ref.shape
    _, t_tile, _ = tgt_emb_ref.shape

    # ---- encoder projection: once per batch block (t == 0), kept resident ----
    @pl.when(pl.program_id(1) == 0)
    def _():
        src2d = src_emb_ref[...].reshape(bt * s_pad, h_pad)
        enc2d = jnp.tanh(jnp.dot(src2d, w_enc_ref[...],
                                 preferred_element_type=jnp.float32))
        enc_scratch[...] = enc2d.reshape(bt, s_pad, h_pad).astype(jnp.bfloat16)

    enc_b = enc_scratch[...]                                          # (Bt,S,H) bf16

    # ---- decoder projection for this T tile ---------------------------------
    tgt2d = tgt_emb_ref[...].reshape(bt * t_tile, h_pad)
    dec2d = jnp.tanh(jnp.dot(tgt2d, w_dec_ref[...],
                             preferred_element_type=jnp.float32))     # (Bt*Tt,H) f32
    # fold 1/sqrt(H) into the small (T,H) operand instead of the (T,S) scores
    dec_scaled = (dec2d * (hidden ** -0.5)).astype(jnp.bfloat16)
    dec_scaled = dec_scaled.reshape(bt, t_tile, h_pad)

    # ---- scaled dot-product cross attention ----------------------------------
    # contraction on the last dims of both operands: transposed-RHS MXU matmul,
    # no XLU transpose of enc (explicit dot_general dimension numbers).
    scores = jax.lax.dot_general(
        dec_scaled, enc_b,
        dimension_numbers=(((2,), (2,)), ((0,), (0,))),
        preferred_element_type=jnp.float32)                           # (Bt,Tt,S) f32
    # additive src_len mask (also masks padded S columns), broadcast over T
    scores = scores + bias_ref[...]

    m = jnp.max(scores, axis=-1, keepdims=True)
    if bf16_softmax:
        # v6e/v7x: bf16 VPU/EUP -> half-width exp + normalize, f32 denom accum.
        e = jnp.exp((scores - m).astype(jnp.bfloat16))
        denom = jnp.sum(e, axis=-1, keepdims=True, dtype=jnp.float32)
        attn_b = e * pl.reciprocal(denom, approx=True).astype(jnp.bfloat16)
    else:
        # v5e (no bf16 VPU/EUP): keep the softmax math in f32.
        e = jnp.exp(scores - m)
        denom = jnp.sum(e, axis=-1, keepdims=True)
        attn_b = (e * pl.reciprocal(denom, approx=True)).astype(jnp.bfloat16)

    # ---- context + output projection -----------------------------------------
    ctx = jax.lax.dot_general(
        attn_b, enc_b,
        dimension_numbers=(((2,), (1,)), ((0,), (0,))),
        preferred_element_type=jnp.float32)                           # (Bt,Tt,H) f32

    out2d = jnp.tanh(
        jnp.dot(ctx.reshape(bt * t_tile, h_pad).astype(jnp.bfloat16),
                w_ctx_ref[...], preferred_element_type=jnp.float32)
        + dec2d)                                                      # (Bt*Tt,H) f32

    out_ref[...] = out2d.reshape(bt, t_tile, h_pad).astype(out_ref.dtype)
    attn_ref[...] = attn_b.astype(attn_ref.dtype)                     # single bf16 cast, reused


def base_model_forward(src, tgt, src_len, params, *, batch_tile=None):
    """src: (B, S, F) int32, tgt: (B, T, F) int32, src_len: (B,) int32."""
    emb_src, emb_tgt, w_enc, w_dec, w_ctx = (
        params["emb_src"], params["emb_tgt"], params["w_enc"],
        params["w_dec"], params["w_ctx"])

    B, S, _ = src.shape
    _, T, _ = tgt.shape
    H = w_enc.shape[0]

    # Lane/sublane-aligned padded shapes (zero padding keeps the math exact:
    # padded H columns / S rows stay 0 through tanh, and padded S columns are
    # masked by the src_len bias).  bf16 packs 16 sublanes per vreg -> T_pad%16.
    H_pad = _round_up(H, 128)
    S_pad = _round_up(S, 128)
    T_pad = _round_up(T, 16)
    if T_pad > 128:                       # tile T so f32 temps stay ~Bt*128*S_pad
        T_pad = _round_up(T_pad, 128)
        Tt = 128
    else:
        Tt = T_pad
    n_t = T_pad // Tt

    # bf16 softmax only where the VPU/EUP are bf16-native (v6e / v7x).
    try:
        kind = jax.devices()[0].device_kind.lower()
    except Exception:
        kind = ""
    bf16_softmax = not any(v in kind for v in ("v2", "v3", "v4", "v5"))

    # Glue: embedding gather + feature sum.  Tables cast to bf16 before the
    # gather (halves HBM bytes), sum in f32, pad copies done in bf16.
    src_emb = jnp.sum(jnp.take(emb_src.astype(jnp.bfloat16), src, axis=0),
                      axis=2, dtype=jnp.float32)                       # (B,S,H)
    tgt_emb = jnp.sum(jnp.take(emb_tgt.astype(jnp.bfloat16), tgt, axis=0),
                      axis=2, dtype=jnp.float32)                       # (B,T,H)
    src_emb = jnp.pad(src_emb.astype(jnp.bfloat16),
                      ((0, 0), (0, S_pad - S), (0, H_pad - H)))
    tgt_emb = jnp.pad(tgt_emb.astype(jnp.bfloat16),
                      ((0, 0), (0, T_pad - T), (0, H_pad - H)))
    w_enc_p = jnp.pad(w_enc.astype(jnp.bfloat16), ((0, H_pad - H), (0, H_pad - H)))
    w_dec_p = jnp.pad(w_dec.astype(jnp.bfloat16), ((0, H_pad - H), (0, H_pad - H)))
    w_ctx_p = jnp.pad(w_ctx.astype(jnp.bfloat16), ((0, H_pad - H), (0, H_pad - H)))

    # Additive src_len mask, shared by every T tile: one broadcast add in-kernel
    # instead of per-batch compares + stack.
    bias = jnp.where(jnp.arange(S_pad)[None, :] < src_len.astype(jnp.int32)[:, None],
                     0.0, -1e30).astype(jnp.float32)[:, None, :]       # (B,1,S_pad)

    # Batch tile: fill the MXU M dimension, but keep >= 2 batch grid steps so
    # the v7x megacore (2 TCs) can shard the "parallel" axis.
    if batch_tile is None:
        target = max(1, 128 // Tt)
        batch_tile = 1
        for d in range(1, B + 1):
            if B % d == 0 and d <= target and (B // d >= 2 or B == 1):
                batch_tile = d
    Bt = batch_tile
    assert B % Bt == 0, "batch_tile must divide batch"
    grid = (B // Bt, n_t)

    # ---- VMEM budget: double-buffered I/O + weights + resident encoder scratch
    # + the f32 in-kernel temporaries (enc2d, dec2d/ctx, scores, e). ------------
    bf, f4 = 2, 4
    io_bytes = (2 * (Bt * S_pad * H_pad * bf            # src_emb
                     + Bt * Tt * H_pad * bf             # tgt_emb
                     + Bt * 1 * S_pad * f4)             # bias
                + 2 * 3 * H_pad * H_pad * bf            # weights (double-buffered)
                + 2 * (Bt * Tt * H_pad * bf             # out
                       + Bt * Tt * S_pad * bf))         # attn
    scratch_bytes = Bt * S_pad * H_pad * bf              # resident encoder tile
    temp_bytes = f4 * (Bt * S_pad * H_pad                # enc2d (t==0)
                       + 2 * Bt * Tt * H_pad             # dec2d + ctx/out2d
                       + 2 * Bt * Tt * S_pad)            # scores + e (conservative)
    step_bytes = io_bytes + scratch_bytes + temp_bytes

    try:
        phys_vmem = pltpu.get_tpu_info().vmem_capacity_bytes
    except Exception:
        phys_vmem = 64 * 1024 * 1024                     # conservative: v7x per-TC VMEM
    vmem_limit = int(min(int(0.8 * phys_vmem),
                         max(2 * step_bytes, 32 * 1024 * 1024)))
    # TODO(synk): for very long S (Bt*Tt*S_pad f32 temps no longer fit), switch
    # the scores/softmax/ctx section to an online-softmax loop over S tiles.

    # Advisory cost hint so XLA overlaps the gather/sum glue with the kernel.
    flops = 2 * (B * S_pad * H_pad * H_pad
                 + 2 * B * T_pad * H_pad * H_pad
                 + 2 * B * T_pad * S_pad * H_pad)
    transcendentals = B * (S_pad * H_pad + 2 * T_pad * H_pad + T_pad * S_pad)
    bytes_accessed = (B * S_pad * H_pad * bf + B * T_pad * H_pad * bf
                      + B * S_pad * f4 + 3 * H_pad * H_pad * bf
                      + B * T_pad * H_pad * bf + B * T_pad * S_pad * bf)
    cost = pl.CostEstimate(flops=int(flops),
                           transcendentals=int(transcendentals),
                           bytes_accessed=int(bytes_accessed))

    grid_spec = pltpu.PrefetchScalarGridSpec(
        num_scalar_prefetch=0,
        grid=grid,
        in_specs=[
            pl.BlockSpec((Bt, S_pad, H_pad), lambda g, t: (g, 0, 0)),
            pl.BlockSpec((Bt, Tt, H_pad), lambda g, t: (g, t, 0)),
            pl.BlockSpec((Bt, 1, S_pad), lambda g, t: (g, 0, 0)),
            pl.BlockSpec((H_pad, H_pad), lambda g, t: (0, 0)),
            pl.BlockSpec((H_pad, H_pad), lambda g, t: (0, 0)),
            pl.BlockSpec((H_pad, H_pad), lambda g, t: (0, 0)),
        ],
        out_specs=[
            pl.BlockSpec((Bt, Tt, H_pad), lambda g, t: (g, t, 0)),
            pl.BlockSpec((Bt, Tt, S_pad), lambda g, t: (g, t, 0)),
        ],
        scratch_shapes=[pltpu.VMEM((Bt, S_pad, H_pad), jnp.bfloat16)],
    )

    dec_out_p, attn_p = pl.pallas_call(
        functools.partial(_enc_dec_kernel, hidden=H, bf16_softmax=bf16_softmax),
        grid_spec=grid_spec,
        out_shape=(
            jax.ShapeDtypeStruct((B, T_pad, H_pad), jnp.bfloat16),
            jax.ShapeDtypeStruct((B, T_pad, S_pad), jnp.bfloat16),
        ),
        compiler_params=pltpu.CompilerParams(
            dimension_semantics=("parallel", "arbitrary"),
            vmem_limit_bytes=vmem_limit),
        cost_estimate=cost,
    )(src_emb, tgt_emb, bias, w_enc_p, w_dec_p, w_ctx_p)

    # Strip alignment padding only when padding was actually added (avoid an
    # extra HBM read+write of the full padded tensors when already aligned).
    dec_out = dec_out_p if (T == T_pad and H == H_pad) else dec_out_p[:, :T, :H]
    attn = attn_p if (T == T_pad and S == S_pad) else attn_p[:, :T, :S]
    return dec_out, {"std": attn}


def _reference_forward(src, tgt, src_len, params):
    """Pure-JAX f32 reference of the same forward math."""
    src_emb = jnp.sum(jnp.take(params["emb_src"], src, axis=0), axis=2)
    tgt_emb = jnp.sum(jnp.take(params["emb_tgt"], tgt, axis=0), axis=2)
    enc = jnp.tanh(src_emb @ params["w_enc"])
    dec = jnp.tanh(tgt_emb @ params["w_dec"])
    H = params["w_enc"].shape[0]
    scores = jnp.einsum("btd,bsd->bts", dec, enc) * (H ** -0.5)
    col = jnp.arange(src.shape[1])[None, None, :]
    scores = jnp.where(col < src_len[:, None, None], scores, -1e30)
    attn = jax.nn.softmax(scores, axis=-1)
    ctx = jnp.einsum("bts,bsd->btd", attn, enc)
    out = jnp.tanh(ctx @ params["w_ctx"] + dec)
    return out, attn


def init_params(key, vocab_src, vocab_tgt, hidden):
    ks = jax.random.split(key, 5)
    scale = 0.1
    return {
        "emb_src": scale * jax.random.normal(ks[0], (vocab_src, hidden), jnp.float32),
        "emb_tgt": scale * jax.random.normal(ks[1], (vocab_tgt, hidden), jnp.float32),
        "w_enc":   scale * jax.random.normal(ks[2], (hidden, hidden), jnp.float32),
        "w_dec":   scale * jax.random.normal(ks[3], (hidden, hidden), jnp.float32),
        "w_ctx":   scale * jax.random.normal(ks[4], (hidden, hidden), jnp.float32),
    }


# TODO(synk): update_dropout / count_parameters / load_state_dict are
# checkpoint / training utilities with no kernel-level equivalent; omitted.

if __name__ == "__main__":
    B, S, T, F, H = 2, 8, 8, 1, 32
    VOCAB_SRC, VOCAB_TGT = 16, 16

    key = jax.random.PRNGKey(0)
    k_src, k_tgt, k_par = jax.random.split(key, 3)

    src = jax.random.randint(k_src, (B, S, F), 0, VOCAB_SRC, dtype=jnp.int32)
    tgt = jax.random.randint(k_tgt, (B, T, F), 0, VOCAB_TGT, dtype=jnp.int32)
    src_len = jnp.array([8, 5], dtype=jnp.int32)   # pre-padding lengths

    params = init_params(k_par, VOCAB_SRC, VOCAB_TGT, H)

    fwd = jax.jit(functools.partial(base_model_forward, params=params))
    dec_out, attns = fwd(src, tgt, src_len)
    jax.block_until_ready((dec_out, attns))

    assert dec_out.shape == (B, T, H)
    assert attns["std"].shape == (B, T, S)

    attn_f32 = attns["std"].astype(jnp.float32)
    # rows sum to 1 (bf16 storage + approx reciprocal => loose tolerance),
    # and attention is zero beyond src_len
    row_sums = jnp.sum(attn_f32, axis=-1)
    assert jnp.allclose(row_sums, 1.0, atol=2e-2)
    assert jnp.all(attn_f32[1, :, 5:] < 1e-6)

    # loose check against a pure-JAX f32 reference (kernel uses bf16 MXU operands)
    ref_out, ref_attn = _reference_forward(src, tgt, src_len, params)
    assert jnp.allclose(dec_out.astype(jnp.float32), ref_out, atol=5e-2)
    assert jnp.allclose(attn_f32, ref_attn, atol=5e-2)

    print("KERNEL_OK")
</pallas_src>

<mosaic_0001>
module attributes {stable_mosaic.version = 11 : i64} {
  func.func @_enc_dec_kernel(%arg0: i32, %arg1: i32, %arg2: memref<1x128x128xbf16, #tpu.memory_space<vmem>>, %arg3: memref<1x16x128xbf16, #tpu.memory_space<vmem>>, %arg4: memref<1x1x128xf32, #tpu.memory_space<vmem>>, %arg5: memref<128x128xbf16, #tpu.memory_space<vmem>>, %arg6: memref<128x128xbf16, #tpu.memory_space<vmem>>, %arg7: memref<128x128xbf16, #tpu.memory_space<vmem>>, %arg8: memref<1x16x128xbf16, #tpu.memory_space<vmem>>, %arg9: memref<1x16x128xbf16, #tpu.memory_space<vmem>>, %arg10: memref<1x128x128xbf16, #tpu.memory_space<vmem>>) attributes {dimension_semantics = [#tpu.dimension_semantics<parallel>, #tpu.dimension_semantics<arbitrary>], iteration_bounds = array<i64: 2, 1>, scalar_prefetch = 0 : i64, scratch_operands = 1 : i64, tpu.core_type = #tpu.core_type<tc>, window_params = [{transform_indices = @transform_0, window_bounds = array<i64: 1, 128, 128>}, {transform_indices = @transform_1, window_bounds = array<i64: 1, 16, 128>}, {transform_indices = @transform_2, window_bounds = array<i64: 1, 1, 128>}, {pipeline_mode = #tpu.pipeline_mode<synchronous>, transform_indices = @transform_3, window_bounds = array<i64: 128, 128>}, {pipeline_mode = #tpu.pipeline_mode<synchronous>, transform_indices = @transform_4, window_bounds = array<i64: 128, 128>}, {pipeline_mode = #tpu.pipeline_mode<synchronous>, transform_indices = @transform_5, window_bounds = array<i64: 128, 128>}, {transform_indices = @transform_6, window_bounds = array<i64: 1, 16, 128>}, {transform_indices = @transform_7, window_bounds = array<i64: 1, 16, 128>}]} {
    %c0_i32 = arith.constant 0 : i32
    %0 = arith.cmpi eq, %arg1, %c0_i32 : i32
    %1 = arith.extui %0 : i1 to i32
    %c0_i32_0 = arith.constant 0 : i32
    %2 = arith.cmpi ne, %1, %c0_i32_0 : i32
    scf.if %2 {
      %c0_25 = arith.constant 0 : index
      %c0_26 = arith.constant 0 : index
      %c0_27 = arith.constant 0 : index
      %41 = vector.load %arg2[%c0_25, %c0_26, %c0_27] : memref<1x128x128xbf16, #tpu.memory_space<vmem>>, vector<1x128x128xbf16>
      %42 = vector.shape_cast %41 : vector<1x128x128xbf16> to vector<128x128xbf16>
      %c0_28 = arith.constant 0 : index
      %c0_29 = arith.constant 0 : index
      %43 = vector.load %arg5[%c0_28, %c0_29] : memref<128x128xbf16, #tpu.memory_space<vmem>>, vector<128x128xbf16>
      %cst_30 = arith.constant dense<0.000000e+00> : vector<128x128xf32>
      %44 = tpu.matmul %42, %43, %cst_30 {dimension_numbers = #tpu.dot_dimension_numbers<[1], [0], [0], [1], [0, 0, 1, 1], [], []>} : vector<128x128xbf16>, vector<128x128xbf16>, vector<128x128xf32> -> vector<128x128xf32>
      %45 = math.tanh %44 : vector<128x128xf32>
      %46 = vector.shape_cast %45 : vector<128x128xf32> to vector<1x128x128xf32>
      %47 = arith.truncf %46 : vector<1x128x128xf32> to vector<1x128x128xbf16>
      %c0_31 = arith.constant 0 : index
      %c0_32 = arith.constant 0 : index
      %c0_33 = arith.constant 0 : index
      %48 = vector.load %arg10[%c0_31, %c0_32, %c0_33] : memref<1x128x128xbf16, #tpu.memory_space<vmem>>, vector<1x128x128xbf16>
      tpu.vector_store %arg10[%c0_31, %c0_32, %c0_33], %47 {strides = array<i32>} : memref<1x128x128xbf16, #tpu.memory_space<vmem>>, vector<1x128x128xbf16>,
    } else {
    }
    %c0 = arith.constant 0 : index
    %c0_1 = arith.constant 0 : index
    %c0_2 = arith.constant 0 : index
    %3 = vector.load %arg10[%c0, %c0_1, %c0_2] : memref<1x128x128xbf16, #tpu.memory_space<vmem>>, vector<1x128x128xbf16>
    %c0_3 = arith.constant 0 : index
    %c0_4 = arith.constant 0 : index
    %c0_5 = arith.constant 0 : index
    %4 = vector.load %arg3[%c0_3, %c0_4, %c0_5] : memref<1x16x128xbf16, #tpu.memory_space<vmem>>, vector<1x16x128xbf16>
    %5 = vector.shape_cast %4 : vector<1x16x128xbf16> to vector<16x128xbf16>
    %c0_6 = arith.constant 0 : index
    %c0_7 = arith.constant 0 : index
    %6 = vector.load %arg6[%c0_6, %c0_7] : memref<128x128xbf16, #tpu.memory_space<vmem>>, vector<128x128xbf16>
    %cst = arith.constant dense<0.000000e+00> : vector<16x128xf32>
    %7 = tpu.matmul %5, %6, %cst {dimension_numbers = #tpu.dot_dimension_numbers<[1], [0], [0], [1], [0, 0, 1, 1], [], []>} : vector<16x128xbf16>, vector<128x128xbf16>, vector<16x128xf32> -> vector<16x128xf32>
    %8 = math.tanh %7 : vector<16x128xf32>
    %cst_8 = arith.constant 0.176776692 : f32
    %9 = vector.broadcast %cst_8 : f32 to vector<16x128xf32>
    %10 = arith.mulf %8, %9 : vector<16x128xf32>
    %11 = arith.truncf %10 : vector<16x128xf32> to vector<16x128xbf16>
    %12 = vector.shape_cast %11 : vector<16x128xbf16> to vector<1x16x128xbf16>
    %cst_9 = arith.constant dense<0.000000e+00> : vector<1x16x128xf32>
    %13 = tpu.matmul %12, %3, %cst_9 {dimension_numbers = #tpu.dot_dimension_numbers<[2], [2], [1], [1], [0, 0, 0, 1, 1, 1], [0], [0]>} : vector<1x16x128xbf16>, vector<1x128x128xbf16>, vector<1x16x128xf32> -> vector<1x16x128xf32>
    %c0_10 = arith.constant 0 : index
    %c0_11 = arith.constant 0 : index
    %c0_12 = arith.constant 0 : index
    %14 = vector.load %arg4[%c0_10, %c0_11, %c0_12] : memref<1x1x128xf32, #tpu.memory_space<vmem>>, vector<1x1x128xf32>
    %15 = vector.broadcast %14 : vector<1x1x128xf32> to vector<1x16x128xf32>
    %16 = arith.addf %13, %15 : vector<1x16x128xf32>
    %cst_13 = arith.constant dense<0xFF800000> : vector<1x16xf32>
    %17 = vector.multi_reduction <maximumf>, %16, %cst_13 [2] : vector<1x16x128xf32> to vector<1x16xf32>
    %18 = vector.shape_cast %17 : vector<1x16xf32> to vector<1x16x1xf32>
    %19 = vector.broadcast %18 : vector<1x16x1xf32> to vector<1x16x128xf32>
    %20 = arith.subf %16, %19 : vector<1x16x128xf32>
    %21 = arith.truncf %20 : vector<1x16x128xf32> to vector<1x16x128xbf16>
    %22 = math.exp %21 : vector<1x16x128xbf16>
    %23 = arith.extf %22 : vector<1x16x128xbf16> to vector<1x16x128xf32>
    %cst_14 = arith.constant dense<0.000000e+00> : vector<1x16xf32>
    %24 = vector.multi_reduction <add>, %23, %cst_14 [2] : vector<1x16x128xf32> to vector<1x16xf32>
    %25 = vector.shape_cast %24 : vector<1x16xf32> to vector<1x16x1xf32>
    %26 = tpu.reciprocal %25 {approx = true} : vector<1x16x1xf32> -> vector<1x16x1xf32>
    %27 = arith.truncf %26 : vector<1x16x1xf32> to vector<1x16x1xbf16>
    %28 = vector.broadcast %27 : vector<1x16x1xbf16> to vector<1x16x128xbf16>
    %29 = arith.mulf %22, %28 : vector<1x16x128xbf16>
    %cst_15 = arith.constant dense<0.000000e+00> : vector<1x16x128xf32>
    %30 = tpu.matmul %29, %3, %cst_15 {dimension_numbers = #tpu.dot_dimension_numbers<[2], [1], [1], [2], [0, 0, 0, 1, 1, 2], [0], [0]>} : vector<1x16x128xbf16>, vector<1x128x128xbf16>, vector<1x16x128xf32> -> vector<1x16x128xf32>
    %31 = vector.shape_cast %30 : vector<1x16x128xf32> to vector<16x128xf32>
    %32 = arith.truncf %31 : vector<16x128xf32> to vector<16x128xbf16>
    %c0_16 = arith.constant 0 : index
    %c0_17 = arith.constant 0 : index
    %33 = vector.load %arg7[%c0_16, %c0_17] : memref<128x128xbf16, #tpu.memory_space<vmem>>, vector<128x128xbf16>
    %cst_18 = arith.constant dense<0.000000e+00> : vector<16x128xf32>
    %34 = tpu.matmul %32, %33, %cst_18 {dimension_numbers = #tpu.dot_dimension_numbers<[1], [0], [0], [1], [0, 0, 1, 1], [], []>} : vector<16x128xbf16>, vector<128x128xbf16>, vector<16x128xf32> -> vector<16x128xf32>
    %35 = arith.addf %34, %8 : vector<16x128xf32>
    %36 = math.tanh %35 : vector<16x128xf32>
    %37 = vector.shape_cast %36 : vector<16x128xf32> to vector<1x16x128xf32>
    %38 = arith.truncf %37 : vector<1x16x128xf32> to vector<1x16x128xbf16>
    %c0_19 = arith.constant 0 : index
    %c0_20 = arith.constant 0 : index
    %c0_21 = arith.constant 0 : index
    %39 = vector.load %arg8[%c0_19, %c0_20, %c0_21] : memref<1x16x128xbf16, #tpu.memory_space<vmem>>, vector<1x16x128xbf16>
    tpu.vector_store %arg8[%c0_19, %c0_20, %c0_21], %38 {strides = array<i32>} : memref<1x16x128xbf16, #tpu.memory_space<vmem>>, vector<1x16x128xbf16>,
    %c0_22 = arith.constant 0 : index
    %c0_23 = arith.constant 0 : index
    %c0_24 = arith.constant 0 : index
    %40 = vector.load %arg9[%c0_22, %c0_23, %c0_24] : memref<1x16x128xbf16, #tpu.memory_space<vmem>>, vector<1x16x128xbf16>
    tpu.vector_store %arg9[%c0_22, %c0_23, %c0_24], %29 {strides = array<i32>} : memref<1x16x128xbf16, #tpu.memory_space<vmem>>, vector<1x16x128xbf16>,
    return
  }
  func.func @transform_0(%arg0: i32, %arg1: i32) -> (i32, i32, i32) {
    %c0_i32 = arith.constant 0 : i32
    %c0_i32_0 = arith.constant 0 : i32
    %c0_i32_1 = arith.constant 0 : i32
    return %arg0, %c0_i32, %c0_i32_0 : i32, i32, i32
  }
  func.func @transform_1(%arg0: i32, %arg1: i32) -> (i32, i32, i32) {
    %c0_i32 = arith.constant 0 : i32
    %c0_i32_0 = arith.constant 0 : i32
    return %arg0, %arg1, %c0_i32 : i32, i32, i32
  }
  func.func @transform_2(%arg0: i32, %arg1: i32) -> (i32, i32, i32) {
    %c0_i32 = arith.constant 0 : i32
    %c0_i32_0 = arith.constant 0 : i32
    %c0_i32_1 = arith.constant 0 : i32
    return %arg0, %c0_i32, %c0_i32_0 : i32, i32, i32
  }
  func.func @transform_3(%arg0: i32, %arg1: i32) -> (i32, i32) {
    %c0_i32 = arith.constant 0 : i32
    %c0_i32_0 = arith.constant 0 : i32
    %c0_i32_1 = arith.constant 0 : i32
    return %c0_i32, %c0_i32_0 : i32, i32
  }
  func.func @transform_4(%arg0: i32, %arg1: i32) -> (i32, i32) {
    %c0_i32 = arith.constant 0 : i32
    %c0_i32_0 = arith.constant 0 : i32
    %c0_i32_1 = arith.constant 0 : i32
    return %c0_i32, %c0_i32_0 : i32, i32
  }
  func.func @transform_5(%arg0: i32, %arg1: i32) -> (i32, i32) {
    %c0_i32 = arith.constant 0 : i32
    %c0_i32_0 = arith.constant 0 : i32
    %c0_i32_1 = arith.constant 0 : i32
    return %c0_i32, %c0_i32_0 : i32, i32
  }
  func.func @transform_6(%arg0: i32, %arg1: i32) -> (i32, i32, i32) {
    %c0_i32 = arith.constant 0 : i32
    %c0_i32_0 = arith.constant 0 : i32
    return %arg0, %arg1, %c0_i32 : i32, i32, i32
  }
  func.func @transform_7(%arg0: i32, %arg1: i32) -> (i32, i32, i32) {
    %c0_i32 = arith.constant 0 : i32
    %c0_i32_0 = arith.constant 0 : i32
    return %arg0, %arg1, %c0_i32 : i32, i32, i32
  }
}

</mosaic_0001>

<llo_original>
// kernel: base_model_forward.1
$region0: #{base_model_forward.1}
  #allocation0 [shape = 'u32[]', space=smem, size = 0x4, offset = 0x4, fixed_abs, tag = 'smem constant byte address 0x4 - core index']
  #allocation1 [shape = 'u32[144,128]{1,0:T(1,128)}', space=vmem, size = 0x12000, scoped, tag = 'internal scratch']
  #allocation2 [shape = 'bf16[1,128,128]{2,1,0:T(8,128)(2,1)}', space=vmem, size = 0x8000, scoped, tag = 'scratch operand']
  %s0 = inlined_call_operand.vmem [shape: bf16[2,128,128], index: 0, kind: input, shape index: {}]
  %s1 = inlined_call_operand.vmem [shape: bf16[2,16,128], index: 1, kind: input, shape index: {}]
  %s2 = inlined_call_operand.vmem [shape: f32[2,1,128], index: 2, kind: input, shape index: {}]
  %s3 = inlined_call_operand.vmem [shape: bf16[128,128], index: 3, kind: input, shape index: {}]
  %s4 = inlined_call_operand.vmem [shape: bf16[128,128], index: 4, kind: input, shape index: {}]
  %s5 = inlined_call_operand.vmem [shape: bf16[128,128], index: 5, kind: input, shape index: {}]
  %s6 = inlined_call_operand.vmem [shape: bf16[2,16,128], index: 6, kind: output, shape index: {0}]
  %s7 = inlined_call_operand.vmem [shape: bf16[2,16,128], index: 7, kind: output, shape index: {1}]
  %8 = xla_tuple %s6, %s7
  %s9 = sld [smem:[#allocation0]]
  $region69: #{base_model_forward.1} parent=0
    _
  %s11 = ssub.s32 1, %s9
  %s12 = scalar_select 0, %s11, %s9
  loop: start=0, step=1, limit=4
  $region2: #{base_model_forward.1} parent=0 // loop_pre_header
    _
  $region3: #{base_model_forward.1} parent=0 // loop_header
    %s14 = sphi 0, %s18
    %p15 = scmp.ge.s32.totalorder %s14, 4
    %s21 = sphi 0, %s33
    %s22 = sphi 0, %s29
    %s23 = sphi 0, %s21
    %s24 = sphi 0, %s22
    %s25 = sphi 0, %s23
    %s26 = sphi 0, %s24
    %s36 = sphi 0, %s38
    %s39 = sphi 0, %s36
    %s40 = sphi 0, %s39
    %s56 = sphi 0, %s40
    %s64 = sphi 0, %s66
    %s67 = sphi 0, %s64
    %s68 = sphi 0, %s67
    %s84 = sphi 0, %s68
    %s90 = sphi 0, %s92
    %s93 = sphi 0, %s90
    %s94 = sphi 0, %s93
    %s110 = sphi 0, %s94
    %s114 = sphi 0, %s114
    %s116 = sphi 0, %s114
    %s117 = sphi 0, %s116
    %s131 = sphi 0, %s117
    %s135 = sphi 0, %s135
    %s137 = sphi 0, %s135
    %s138 = sphi 0, %s137
    %s152 = sphi 0, %s138
    %s156 = sphi 0, %s156
    %s158 = sphi 0, %s156
    %s159 = sphi 0, %s158
    %s173 = sphi 0, %s159
    %s181 = sphi 0, %s183
    %s184 = sphi 0, %s181
    %s185 = sphi 0, %s184
    %s201 = sphi 0, %s185
    %s209 = sphi 0, %s211
    %s212 = sphi 0, %s209
    %s213 = sphi 0, %s212
    %s229 = sphi 0, %s213
  $region4: #{base_model_forward.1} parent=0 // loop_header_branch
    %17 = sbr.rel (%p15) target = $region8
  $region5: #{base_model_forward.1} parent=0 // loop_body
    %s19 = ssub.s32 %s14, 1
    %s20 = ssub.s32 %s14, 2
    %s27 = sadd.s32 1, %s22
    %p28 = scmp.ge.s32.totalorder %s27, 1
    %s29 = scalar_select %p28, 0, %s27
    %s30 = sadd.s32 1, %s21
    %s31 = scalar_select %p28, %s30, %s21
    %p32 = scmp.ge.s32.totalorder %s31, 2
    %s33 = scalar_select %p32, 0, %s31
    %s34 = ssub.s32 %s21, %s33
    %p35 = scmp.eq.s32.totalorder %s34, 0
    %s37 = sadd.s32 %s36, 1
    %s38 = scalar_select %p35, %s36, %s37
    %p41 = pneg %p35
    %p42 = scmp.eq.s32.totalorder %s14, 1
    %p43 = por %p41, %p42
    %p44 = scmp.ne.s32.totalorder %s36, %s39
    %p45 = scmp.eq.s32.totalorder %s14, 0
    %p46 = por %p44, %p45
    %p47 = scmp.ne.s32.totalorder %s36, %s39
    %p48 = scmp.eq.s32.totalorder %s19, 1
    %p49 = por %p47, %p48
    %p50 = scmp.ne.s32.totalorder %s39, %s40
    %p51 = scmp.eq.s32.totalorder %s19, 0
    %p52 = por %p50, %p51
    %p53 = scmp.ne.s32.totalorder %s39, %s40
    %p54 = scmp.eq.s32.totalorder %s20, 1
    %p55 = por %p53, %p54
    %p57 = scmp.ne.s32.totalorder %s40, %s56
    %p58 = scmp.eq.s32.totalorder %s20, 0
    %p59 = por %p57, %p58
    %s60 = ssub.s32 %s21, %s33
    %s61 = ssub.s32 %s22, %s29
    %s62 = sor.u32 %s60, %s61
    %p63 = scmp.eq.s32.totalorder %s62, 0
    %s65 = sadd.s32 %s64, 1
    %s66 = scalar_select %p63, %s64, %s65
    %p69 = pneg %p63
    %p70 = scmp.eq.s32.totalorder %s14, 1
    %p71 = por %p69, %p70
    %p72 = scmp.ne.s32.totalorder %s64, %s67
    %p73 = scmp.eq.s32.totalorder %s14, 0
    %p74 = por %p72, %p73
    %p75 = scmp.ne.s32.totalorder %s64, %s67
    %p76 = scmp.eq.s32.totalorder %s19, 1
    %p77 = por %p75, %p76
    %p78 = scmp.ne.s32.totalorder %s67, %s68
    %p79 = scmp.eq.s32.totalorder %s19, 0
    %p80 = por %p78, %p79
    %p81 = scmp.ne.s32.totalorder %s67, %s68
    %p82 = scmp.eq.s32.totalorder %s20, 1
    %p83 = por %p81, %p82
    %p85 = scmp.ne.s32.totalorder %s68, %s84
    %p86 = scmp.eq.s32.totalorder %s20, 0
    %p87 = por %p85, %p86
    %s88 = ssub.s32 %s21, %s33
    %p89 = scmp.eq.s32.totalorder %s88, 0
    %s91 = sadd.s32 %s90, 1
    %s92 = scalar_select %p89, %s90, %s91
    %p95 = pneg %p89
    %p96 = scmp.eq.s32.totalorder %s14, 1
    %p97 = por %p95, %p96
    %p98 = scmp.ne.s32.totalorder %s90, %s93
    %p99 = scmp.eq.s32.totalorder %s14, 0
    %p100 = por %p98, %p99
    %p101 = scmp.ne.s32.totalorder %s90, %s93
    %p102 = scmp.eq.s32.totalorder %s19, 1
    %p103 = por %p101, %p102
    %p104 = scmp.ne.s32.totalorder %s93, %s94
    %p105 = scmp.eq.s32.totalorder %s19, 0
    %p106 = por %p104, %p105
    %p107 = scmp.ne.s32.totalorder %s93, %s94
    %p108 = scmp.eq.s32.totalorder %s20, 1
    %p109 = por %p107, %p108
    %p111 = scmp.ne.s32.totalorder %s94, %s110
    %p112 = scmp.eq.s32.totalorder %s20, 0
    %p113 = por %p111, %p112
    %s115 = sadd.s32 %s114, 1
    %p118 = scmp.eq.s32.totalorder %s14, 1
    %p119 = scmp.ne.s32.totalorder %s114, %s116
    %p120 = scmp.eq.s32.totalorder %s14, 0
    %p121 = por %p119, %p120
    %p122 = scmp.ne.s32.totalorder %s114, %s116
    %p123 = scmp.eq.s32.totalorder %s19, 1
    %p124 = por %p122, %p123
    %p125 = scmp.ne.s32.totalorder %s116, %s117
    %p126 = scmp.eq.s32.totalorder %s19, 0
    %p127 = por %p125, %p126
    %p128 = scmp.ne.s32.totalorder %s116, %s117
    %p129 = scmp.eq.s32.totalorder %s20, 1
    %p130 = por %p128, %p129
    %p132 = scmp.ne.s32.totalorder %s117, %s131
    %p133 = scmp.eq.s32.totalorder %s20, 0
    %p134 = por %p132, %p133
    %s136 = sadd.s32 %s135, 1
    %p139 = scmp.eq.s32.totalorder %s14, 1
    %p140 = scmp.ne.s32.totalorder %s135, %s137
    %p141 = scmp.eq.s32.totalorder %s14, 0
    %p142 = por %p140, %p141
    %p143 = scmp.ne.s32.totalorder %s135, %s137
    %p144 = scmp.eq.s32.totalorder %s19, 1
    %p145 = por %p143, %p144
    %p146 = scmp.ne.s32.totalorder %s137, %s138
    %p147 = scmp.eq.s32.totalorder %s19, 0
    %p148 = por %p146, %p147
    %p149 = scmp.ne.s32.totalorder %s137, %s138
    %p150 = scmp.eq.s32.totalorder %s20, 1
    %p151 = por %p149, %p150
    %p153 = scmp.ne.s32.totalorder %s138, %s152
    %p154 = scmp.eq.s32.totalorder %s20, 0
    %p155 = por %p153, %p154
    %s157 = sadd.s32 %s156, 1
    %p160 = scmp.eq.s32.totalorder %s14, 1
    %p161 = scmp.ne.s32.totalorder %s156, %s158
    %p162 = scmp.eq.s32.totalorder %s14, 0
    %p163 = por %p161, %p162
    %p164 = scmp.ne.s32.totalorder %s156, %s158
    %p165 = scmp.eq.s32.totalorder %s19, 1
    %p166 = por %p164, %p165
    %p167 = scmp.ne.s32.totalorder %s158, %s159
    %p168 = scmp.eq.s32.totalorder %s19, 0
    %p169 = por %p167, %p168
    %p170 = scmp.ne.s32.totalorder %s158, %s159
    %p171 = scmp.eq.s32.totalorder %s20, 1
    %p172 = por %p170, %p171
    %p174 = scmp.ne.s32.totalorder %s159, %s173
    %p175 = scmp.eq.s32.totalorder %s20, 0
    %p176 = por %p174, %p175
    %s177 = ssub.s32 %s21, %s33
    %s178 = ssub.s32 %s22, %s29
    %s179 = sor.u32 %s177, %s178
    %p180 = scmp.eq.s32.totalorder %s179, 0
    %s182 = sadd.s32 %s181, 1
    %s183 = scalar_select %p180, %s181, %s182
    %p186 = pneg %p180
    %p187 = scmp.eq.s32.totalorder %s14, 1
    %p188 = por %p186, %p187
    %p189 = scmp.ne.s32.totalorder %s181, %s184
    %p190 = scmp.eq.s32.totalorder %s14, 0
    %p191 = por %p189, %p190
    %p192 = scmp.ne.s32.totalorder %s181, %s184
    %p193 = scmp.eq.s32.totalorder %s19, 1
    %p194 = por %p192, %p193
    %p195 = scmp.ne.s32.totalorder %s184, %s185
    %p196 = scmp.eq.s32.totalorder %s19, 0
    %p197 = por %p195, %p196
    %p198 = scmp.ne.s32.totalorder %s184, %s185
    %p199 = scmp.eq.s32.totalorder %s20, 1
    %p200 = por %p198, %p199
    %p202 = scmp.ne.s32.totalorder %s185, %s201
    %p203 = scmp.eq.s32.totalorder %s20, 0
    %p204 = por %p202, %p203
    %s205 = ssub.s32 %s21, %s33
    %s206 = ssub.s32 %s22, %s29
    %s207 = sor.u32 %s205, %s206
    %p208 = scmp.eq.s32.totalorder %s207, 0
    %s210 = sadd.s32 %s209, 1
    %s211 = scalar_select %p208, %s209, %s210
    %p214 = pneg %p208
    %p215 = scmp.eq.s32.totalorder %s14, 1
    %p216 = por %p214, %p215
    %p217 = scmp.ne.s32.totalorder %s209, %s212
    %p218 = scmp.eq.s32.totalorder %s14, 0
    %p219 = por %p217, %p218
    %p220 = scmp.ne.s32.totalorder %s209, %s212
    %p221 = scmp.eq.s32.totalorder %s19, 1
    %p222 = por %p220, %p221
    %p223 = scmp.ne.s32.totalorder %s212, %s213
    %p224 = scmp.eq.s32.totalorder %s19, 0
    %p225 = por %p223, %p224
    %p226 = scmp.ne.s32.totalorder %s212, %s213
    %p227 = scmp.eq.s32.totalorder %s20, 1
    %p228 = por %p226, %p227
    %p230 = scmp.ne.s32.totalorder %s213, %s229
    %p231 = scmp.eq.s32.totalorder %s20, 0
    %p232 = por %p230, %p231
    %p233 = scmp.le.s32.totalorder 1, %s14
    %p234 = scmp.lt.s32.totalorder %s14, 3
    %p235 = pnand %p233, %p234
    %p236 = pneg %p235
    // Predicated region
    $region9: #{base_model_forward.1} parent=5 // pred_check
      _
    $region10: #{base_model_forward.1} parent=5 // pred_check_branch
      %238 = sbr.rel (%p235) target = $region12
    $region11: #{base_model_forward.1} parent=5 // pred_region
      %s239 = ssub.s32 %s14, 1
      // Predicated region
      $region13: #{base_model_forward.1} parent=11 // pred_check
        %p240 = pneg %p127
      $region14: #{base_model_forward.1} parent=11 // pred_check_branch
        %242 = sbr.rel (%p240) target = $region16
      $region15: #{base_model_forward.1} parent=11 // pred_region
        _
      $region16: #{base_model_forward.1} parent=11 // pred_fallthru
        _
      // Predicated region
      $region17: #{base_model_forward.1} parent=11 // pred_check
        %p243 = pneg %p148
      $region18: #{base_model_forward.1} parent=11 // pred_check_branch
        %245 = sbr.rel (%p243) target = $region20
      $region19: #{base_model_forward.1} parent=11 // pred_region
        _
      $region20: #{base_model_forward.1} parent=11 // pred_fallthru
        _
      // Predicated region
      $region21: #{base_model_forward.1} parent=11 // pred_check
        %p246 = pneg %p169
      $region22: #{base_model_forward.1} parent=11 // pred_check_branch
        %248 = sbr.rel (%p246) target = $region24
      $region23: #{base_model_forward.1} parent=11 // pred_region
        _
      $region24: #{base_model_forward.1} parent=11 // pred_fallthru
        _
    $region12: #{base_model_forward.1} parent=5 // pred_fallthru
      _
    %p249 = scmp.lt.s32.totalorder %s14, 2
    // Predicated region
    $region25: #{base_model_forward.1} parent=5 // pred_check
      %p250 = pneg %p249
    $region26: #{base_model_forward.1} parent=5 // pred_check_branch
      %252 = sbr.rel (%p250) target = $region28
    $region27: #{base_model_forward.1} parent=5 // pred_region
      // Predicated region
      $region29: #{base_model_forward.1} parent=27 // pred_check
        %p253 = pneg %p46
      $region30: #{base_model_forward.1} parent=27 // pred_check_branch
        %255 = sbr.rel (%p253) target = $region32
      $region31: #{base_model_forward.1} parent=27 // pred_region
        %p256 = scmp.lt.s32.totalorder %s21, 1
        %s257 = scalar_select %p256, %s21, 1
        %s258 = smul.addr %s257, 16
        %s259 = smul.addr %s258, 4
        %s260 = scalar_lea.vmem %s0, %s259
      $region32: #{base_model_forward.1} parent=27 // pred_fallthru
        _
      // Predicated region
      $region33: #{base_model_forward.1} parent=27 // pred_check
        %p261 = pneg %p74
      $region34: #{base_model_forward.1} parent=27 // pred_check_branch
        %263 = sbr.rel (%p261) target = $region36
      $region35: #{base_model_forward.1} parent=27 // pred_region
        %s264 = smul.u32 2, %s22
        %p265 = scmp.lt.s32.totalorder %s21, 1
        %s266 = scalar_select %p265, %s21, 1
        %p267 = scmp.lt.s32.totalorder %s264, 1
        %s268 = scalar_select %p267, %s264, 1
        %s269 = smul.addr %s266, 2
        %s270 = sadd.s32 %s268, %s269
        %s271 = smul.addr %s270, 4
        %s272 = scalar_lea.vmem %s1, %s271
        %s273 = smul.u32 2, %s22
      $region36: #{base_model_forward.1} parent=27 // pred_fallthru
        _
      // Predicated region
      $region37: #{base_model_forward.1} parent=27 // pred_check
        %p274 = pneg %p100
      $region38: #{base_model_forward.1} parent=27 // pred_check_branch
        %276 = sbr.rel (%p274) target = $region40
      $region39: #{base_model_forward.1} parent=27 // pred_region
        %p277 = scmp.lt.s32.totalorder %s21, 1
        %s278 = scalar_select %p277, %s21, 1
        %s279 = scalar_lea.vmem %s2, %s278
      $region40: #{base_model_forward.1} parent=27 // pred_fallthru
        _
    $region28: #{base_model_forward.1} parent=5 // pred_fallthru
      _
    %p280 = scmp.le.s32.totalorder 1, %s14
    %p281 = scmp.lt.s32.totalorder %s14, 3
    %p282 = pnand %p280, %p281
    %p283 = pneg %p282
    // Predicated region
    $region41: #{base_model_forward.1} parent=5 // pred_check
      _
    $region42: #{base_model_forward.1} parent=5 // pred_check_branch
      %285 = sbr.rel (%p282) target = $region44
    $region43: #{base_model_forward.1} parent=5 // pred_region
      %s286 = ssub.s32 %s14, 1
      %p287 = scmp.lt.s32.totalorder %s23, 1
      %s288 = scalar_select %p287, %s23, 1
      %s289 = smul.addr %s288, 16
      %s290 = smul.addr %s289, 4
      %s291 = scalar_lea.vmem %s0, %s290
      %p292 = pneg %p52
      %p293 = pneg %p49
      %s294 = smul.u32 2, %s24
      %p295 = scmp.lt.s32.totalorder %s23, 1
      %s296 = scalar_select %p295, %s23, 1
      %p297 = scmp.lt.s32.totalorder %s294, 1
      %s298 = scalar_select %p297, %s294, 1
      %s299 = smul.addr %s296, 2
      %s300 = sadd.s32 %s298, %s299
      %s301 = smul.addr %s300, 4
      %s302 = scalar_lea.vmem %s1, %s301
      %p303 = pneg %p80
      %p304 = pneg %p77
      %p305 = scmp.lt.s32.totalorder %s23, 1
      %s306 = scalar_select %p305, %s23, 1
      %s307 = scalar_lea.vmem %s2, %s306
      %p308 = pneg %p106
      %p309 = pneg %p103
      %p310 = pneg %p127
      %p311 = pneg %p124
      %p312 = pneg %p148
      %p313 = pneg %p145
      %p314 = pneg %p169
      %p315 = pneg %p166
      %p316 = pneg %p197
      %p317 = pneg %p194
      %s318 = smul.u32 2, %s24
      %p319 = scmp.lt.s32.totalorder %s23, 1
      %s320 = scalar_select %p319, %s23, 1
      %p321 = scmp.lt.s32.totalorder %s318, 1
      %s322 = scalar_select %p321, %s318, 1
      %s323 = smul.addr %s320, 2
      %s324 = sadd.s32 %s322, %s323
      %s325 = smul.addr %s324, 4
      %s326 = scalar_lea.vmem %s6, %s325
      %p327 = pneg %p225
      %p328 = pneg %p222
      %s329 = smul.u32 2, %s24
      %p330 = scmp.lt.s32.totalorder %s23, 1
      %s331 = scalar_select %p330, %s23, 1
      %p332 = scmp.lt.s32.totalorder %s329, 1
      %s333 = scalar_select %p332, %s329, 1
      %s334 = smul.addr %s331, 2
      %s335 = sadd.s32 %s333, %s334
      %s336 = smul.addr %s335, 4
      %s337 = scalar_lea.vmem %s7, %s336
      %p338 = scmp.lt.s32.totalorder %s23, 1
      %s339 = scalar_select %p338, %s23, 1
      %s340 = smul.addr %s339, 16
      %s341 = smul.addr %s340, 4
      %s342 = scalar_lea.vmem %s0, %s341
      %s343 = smul.u32 2, %s24
      %p344 = scmp.lt.s32.totalorder %s23, 1
      %s345 = scalar_select %p344, %s23, 1
      %p346 = scmp.lt.s32.totalorder %s343, 1
      %s347 = scalar_select %p346, %s343, 1
      %s348 = smul.addr %s345, 2
      %s349 = sadd.s32 %s347, %s348
      %s350 = smul.addr %s349, 4
      %s351 = scalar_lea.vmem %s1, %s350
      %s352 = smul.u32 2, %s24
      %p353 = scmp.lt.s32.totalorder %s23, 1
      %s354 = scalar_select %p353, %s23, 1
      %s355 = scalar_lea.vmem %s2, %s354
      %s356 = smul.u32 2, %s24
      %p357 = scmp.lt.s32.totalorder %s23, 1
      %s358 = scalar_select %p357, %s23, 1
      %p359 = scmp.lt.s32.totalorder %s356, 1
      %s360 = scalar_select %p359, %s356, 1
      %s361 = smul.addr %s358, 2
      %s362 = sadd.s32 %s360, %s361
      %s363 = smul.addr %s362, 4
      %s364 = scalar_lea.vmem %s6, %s363
      %s365 = smul.u32 2, %s24
      %s366 = smul.u32 2, %s24
      %p367 = scmp.lt.s32.totalorder %s23, 1
      %s368 = scalar_select %p367, %s23, 1
      %p369 = scmp.lt.s32.totalorder %s366, 1
      %s370 = scalar_select %p369, %s366, 1
      %s371 = smul.addr %s368, 2
      %s372 = sadd.s32 %s370, %s371
      %s373 = smul.addr %s372, 4
      %s374 = scalar_lea.vmem %s7, %s373
      %s375 = smul.u32 2, %s24
      %p377 = scmp.eq.s32.totalorder %s24, 0
      // Predicated region
      $region45: #{base_model_forward.1} parent=43 // pred_check
        %p378 = pneg %p377
      $region46: #{base_model_forward.1} parent=43 // pred_check_branch
        %380 = sbr.rel (%p378) target = $region48
      $region47: #{base_model_forward.1} parent=43 // pred_region
        %v381 = vld [vmem:[%s342] sm:$0xf]
        %v382 = vld [vmem:[%s342 + $0x4] sm:$0xf]
        %v383 = vld [vmem:[%s342 + $0x8] sm:$0xf]
        %v384 = vld [vmem:[%s342 + $0xc] sm:$0xf]
        %v385 = vld [vmem:[%s342 + $0x10] sm:$0xf]
        %v386 = vld [vmem:[%s342 + $0x14] sm:$0xf]
        %v387 = vld [vmem:[%s342 + $0x18] sm:$0xf]
        %v388 = vld [vmem:[%s342 + $0x1c] sm:$0xf]
        %v389 = vld [vmem:[%s342 + $0x20] sm:$0xf]
        %v390 = vld [vmem:[%s342 + $0x24] sm:$0xf]
        %v391 = vld [vmem:[%s342 + $0x28] sm:$0xf]
        %v392 = vld [vmem:[%s342 + $0x2c] sm:$0xf]
        %v393 = vld [vmem:[%s342 + $0x30] sm:$0xf]
        %v394 = vld [vmem:[%s342 + $0x34] sm:$0xf]
        %v395 = vld [vmem:[%s342 + $0x38] sm:$0xf]
        %v396 = vld [vmem:[%s342 + $0x3c] sm:$0xf]
        %v397 = vld [vmem:[%s3] sm:$0xf]
        %v398 = vld [vmem:[%s3 + $0x4] sm:$0xf]
        %v399 = vld [vmem:[%s3 + $0x8] sm:$0xf]
        %v400 = vld [vmem:[%s3 + $0xc] sm:$0xf]
        %v401 = vld [vmem:[%s3 + $0x10] sm:$0xf]
        %v402 = vld [vmem:[%s3 + $0x14] sm:$0xf]
        %v403 = vld [vmem:[%s3 + $0x18] sm:$0xf]
        %v404 = vld [vmem:[%s3 + $0x1c] sm:$0xf]
        %v405 = vld [vmem:[%s3 + $0x20] sm:$0xf]
        %v406 = vld [vmem:[%s3 + $0x24] sm:$0xf]
        %v407 = vld [vmem:[%s3 + $0x28] sm:$0xf]
        %v408 = vld [vmem:[%s3 + $0x2c] sm:$0xf]
        %v409 = vld [vmem:[%s3 + $0x30] sm:$0xf]
        %v410 = vld [vmem:[%s3 + $0x34] sm:$0xf]
        %v411 = vld [vmem:[%s3 + $0x38] sm:$0xf]
        %v412 = vld [vmem:[%s3 + $0x3c] sm:$0xf]
        %v429 = vunpack.c.l.b16 %v381
        %v430 = vunpack.c.l.b16 %v382
        %v431 = vunpack.c.l.b16 %v383
        %v432 = vunpack.c.l.b16 %v384
        %v433 = vunpack.c.l.b16 %v385
        %v434 = vunpack.c.l.b16 %v386
        %v435 = vunpack.c.l.b16 %v387
        %v436 = vunpack.c.l.b16 %v388
        %v437 = vunpack.c.l.b16 %v389
        %v438 = vunpack.c.l.b16 %v390
        %v439 = vunpack.c.l.b16 %v391
        %v440 = vunpack.c.l.b16 %v392
        %v441 = vunpack.c.l.b16 %v393
        %v442 = vunpack.c.l.b16 %v394
        %v443 = vunpack.c.l.b16 %v395
        %v444 = vunpack.c.l.b16 %v396
        %v445 = vpack.c.b16 %v430, %v429
        %v446 = vpack.c.b16 %v432, %v431
        %v447 = vpack.c.b16 %v434, %v433
        %v448 = vpack.c.b16 %v436, %v435
        %v449 = vpack.c.b16 %v438, %v437
        %v450 = vpack.c.b16 %v440, %v439
        %v451 = vpack.c.b16 %v442, %v441
        %v452 = vpack.c.b16 %v444, %v443
        %v477 = vunpack.c.l.b16 %v397
        %v478 = vunpack.c.l.b16 %v398
        %v479 = vunpack.c.l.b16 %v399
        %v480 = vunpack.c.l.b16 %v400
        %v481 = vunpack.c.l.b16 %v401
        %v482 = vunpack.c.l.b16 %v402
        %v483 = vunpack.c.l.b16 %v403
        %v484 = vunpack.c.l.b16 %v404
        %v485 = vunpack.c.l.b16 %v405
        %v486 = vunpack.c.l.b16 %v406
        %v487 = vunpack.c.l.b16 %v407
        %v488 = vunpack.c.l.b16 %v408
        %v489 = vunpack.c.l.b16 %v409
        %v490 = vunpack.c.l.b16 %v410
        %v491 = vunpack.c.l.b16 %v411
        %v492 = vunpack.c.l.b16 %v412
        %v493 = vpack.c.b16 %v478, %v477
        %v494 = vpack.c.b16 %v480, %v479
        %v495 = vpack.c.b16 %v482, %v481
        %v496 = vpack.c.b16 %v484, %v483
        %v497 = vpack.c.b16 %v486, %v485
        %v498 = vpack.c.b16 %v488, %v487
        %v499 = vpack.c.b16 %v490, %v489
        %v500 = vpack.c.b16 %v492, %v491
        %509 = vmatprep.subr.bf16.mxu0 0
        %510 = vmatpush1.bf16.msra.mxu0 %v500
        %511 = vmatprep.subr.bf16.mxu0 0
        %512 = vmatpush1.bf16.msra.mxu0 %v499
        %513 = vmatprep.subr.bf16.mxu0 0
        %514 = vmatpush1.bf16.msra.mxu0 %v498
        %515 = vmatprep.subr.bf16.mxu0 0
        %516 = vmatpush1.bf16.msra.mxu0 %v497
        %517 = vmatprep.subr.bf16.mxu0 0
        %518 = vmatpush1.bf16.msra.mxu0 %v496
        %519 = vmatprep.subr.bf16.mxu0 0
        %520 = vmatpush1.bf16.msra.mxu0 %v495
        %521 = vmatprep.subr.bf16.mxu0 0
        %522 = vmatpush1.bf16.msra.mxu0 %v494
        %523 = vmatprep.subr.bf16.mxu0 0
        %524 = vmatpush1.bf16.msra.mxu0 %v493
        %525 = vmatprep.subr.bf16.mxu0 0
        %526 = vmatpush2.bf16.msra.mxu0 0
        %527 = vmatprep.subr.bf16.mxu0 0
        %528 = vmatpush2.bf16.msra.mxu0 0
        %529 = vmatprep.subr.bf16.mxu0 0
        %530 = vmatpush2.bf16.msra.mxu0 0
        %531 = vmatprep.subr.bf16.mxu0 0
        %532 = vmatpush2.bf16.msra.mxu0 0
        %533 = vmatprep.subr.bf16.mxu0 0
        %534 = vmatpush2.bf16.msra.mxu0 0
        %535 = vmatprep.subr.bf16.mxu0 0
        %536 = vmatpush2.bf16.msra.mxu0 0
        %537 = vmatprep.subr.bf16.mxu0 0
        %538 = vmatpush2.bf16.msra.mxu0 0
        %539 = vmatprep.subr.bf16.mxu0 0
        %540 = vmatpush2.bf16.msra.mxu0 0
        %541 = vmatprep.mubr.bf16.mxu0 0
        %542 = vmatmul.mubr.bf16.gmra.mxu0 %v445
        %v543 = vpop.f32.mrf.mxu0
        %v544 = vadd.f32 0.0, %v543
        %v545 = vpop.f32.mrf.mxu0
        %v546 = vpop.f32.mrf.mxu0
        %v547 = vadd.f32 0.0, %v546
        %v548 = vpop.f32.mrf.mxu0
        %549 = vmatprep.mubr.bf16.mxu0 0
        %550 = vmatmul.mubr.bf16.gmra.mxu0 %v446
        %v551 = vpop.f32.mrf.mxu0
        %v552 = vadd.f32 0.0, %v551
        %v553 = vpop.f32.mrf.mxu0
        %v554 = vpop.f32.mrf.mxu0
        %v555 = vadd.f32 0.0, %v554
        %v556 = vpop.f32.mrf.mxu0
        %557 = vmatprep.mubr.bf16.mxu0 0
        %558 = vmatmul.mubr.bf16.gmra.mxu0 %v447
        %v559 = vpop.f32.mrf.mxu0
        %v560 = vadd.f32 0.0, %v559
        %v561 = vpop.f32.mrf.mxu0
        %v562 = vpop.f32.mrf.mxu0
        %v563 = vadd.f32 0.0, %v562
        %v564 = vpop.f32.mrf.mxu0
        %565 = vmatprep.mubr.bf16.mxu0 0
        %566 = vmatmul.mubr.bf16.gmra.mxu0 %v448
        %v567 = vpop.f32.mrf.mxu0
        %v568 = vadd.f32 0.0, %v567
        %v569 = vpop.f32.mrf.mxu0
        %v570 = vpop.f32.mrf.mxu0
        %v571 = vadd.f32 0.0, %v570
        %v572 = vpop.f32.mrf.mxu0
        %573 = vmatprep.mubr.bf16.mxu0 0
        %574 = vmatmul.mubr.bf16.gmra.mxu0 %v449
        %v575 = vpop.f32.mrf.mxu0
        %v576 = vadd.f32 0.0, %v575
        %v577 = vpop.f32.mrf.mxu0
        %v578 = vpop.f32.mrf.mxu0
        %v579 = vadd.f32 0.0, %v578
        %v580 = vpop.f32.mrf.mxu0
        %581 = vmatprep.mubr.bf16.mxu0 0
        %582 = vmatmul.mubr.bf16.gmra.mxu0 %v450
        %v583 = vpop.f32.mrf.mxu0
        %v584 = vadd.f32 0.0, %v583
        %v585 = vpop.f32.mrf.mxu0
        %v586 = vpop.f32.mrf.mxu0
        %v587 = vadd.f32 0.0, %v586
        %v588 = vpop.f32.mrf.mxu0
        %589 = vmatprep.mubr.bf16.mxu0 0
        %590 = vmatmul.mubr.bf16.gmra.mxu0 %v451
        %v591 = vpop.f32.mrf.mxu0
        %v592 = vadd.f32 0.0, %v591
        %v593 = vpop.f32.mrf.mxu0
        %v594 = vpop.f32.mrf.mxu0
        %v595 = vadd.f32 0.0, %v594
        %v596 = vpop.f32.mrf.mxu0
        %597 = vmatprep.mubr.bf16.mxu0 0
        %598 = vmatmul.mubr.bf16.gmra.mxu0 %v452
        %v599 = vpop.f32.mrf.mxu0
        %v600 = vadd.f32 0.0, %v599
        %v601 = vpop.f32.mrf.mxu0
        %v602 = vpop.f32.mrf.mxu0
        %v603 = vadd.f32 0.0, %v602
        %v604 = vpop.f32.mrf.mxu0
        %605 = vdwg.mxu0
        %v606 = vtanh.pop %v544
        %v607 = vtanh.pop %v547
        %v608 = vtanh.pop %v552
        %v609 = vtanh.pop %v555
        %v610 = vtanh.pop %v560
        %v611 = vtanh.pop %v563
        %v612 = vtanh.pop %v568
        %v613 = vtanh.pop %v571
        %v614 = vtanh.pop %v576
        %v615 = vtanh.pop %v579
        %v616 = vtanh.pop %v584
        %v617 = vtanh.pop %v587
        %v618 = vtanh.pop %v592
        %v619 = vtanh.pop %v595
        %v620 = vtanh.pop %v600
        %v621 = vtanh.pop %v603
        %v622 = vpack.c.bf16 %v607, %v606
        %v623 = vpack.c.bf16 %v609, %v608
        %v624 = vpack.c.bf16 %v611, %v610
        %v625 = vpack.c.bf16 %v613, %v612
        %v626 = vpack.c.bf16 %v615, %v614
        %v627 = vpack.c.bf16 %v617, %v616
        %v628 = vpack.c.bf16 %v619, %v618
        %v629 = vpack.c.bf16 %v621, %v620
        %v638 = vunpack.c.l.b16 %v622
        %v639 = vunpack.c.h.b16 %v622
        %v640 = vunpack.c.l.b16 %v623
        %v641 = vunpack.c.h.b16 %v623
        %v642 = vunpack.c.l.b16 %v624
        %v643 = vunpack.c.h.b16 %v624
        %v644 = vunpack.c.l.b16 %v625
        %v645 = vunpack.c.h.b16 %v625
        %v646 = vunpack.c.l.b16 %v626
        %v647 = vunpack.c.h.b16 %v626
        %v648 = vunpack.c.l.b16 %v627
        %v649 = vunpack.c.h.b16 %v627
        %v650 = vunpack.c.l.b16 %v628
        %v651 = vunpack.c.h.b16 %v628
        %v652 = vunpack.c.l.b16 %v629
        %v653 = vunpack.c.h.b16 %v629
        %v654 = vpack.c.b16 %v638, %v638
        %v655 = vpack.c.b16 %v639, %v639
        %v656 = vpack.c.b16 %v640, %v640
        %v657 = vpack.c.b16 %v641, %v641
        %v658 = vpack.c.b16 %v642, %v642
        %v659 = vpack.c.b16 %v643, %v643
        %v660 = vpack.c.b16 %v644, %v644
        %v661 = vpack.c.b16 %v645, %v645
        %v662 = vpack.c.b16 %v646, %v646
        %v663 = vpack.c.b16 %v647, %v647
        %v664 = vpack.c.b16 %v648, %v648
        %v665 = vpack.c.b16 %v649, %v649
        %v666 = vpack.c.b16 %v650, %v650
        %v667 = vpack.c.b16 %v651, %v651
        %v668 = vpack.c.b16 %v652, %v652
        %v669 = vpack.c.b16 %v653, %v653
        %686 = vst [vmem:[#allocation2] sm:$0xf] %v654
        %687 = vst [vmem:[#allocation2 + $0x4] sm:$0xf] %v655
        %688 = vst [vmem:[#allocation2 + $0x8] sm:$0xf] %v656
        %689 = vst [vmem:[#allocation2 + $0xc] sm:$0xf] %v657
        %690 = vst [vmem:[#allocation2 + $0x10] sm:$0xf] %v658
        %691 = vst [vmem:[#allocation2 + $0x14] sm:$0xf] %v659
        %692 = vst [vmem:[#allocation2 + $0x18] sm:$0xf] %v660
        %693 = vst [vmem:[#allocation2 + $0x1c] sm:$0xf] %v661
        %694 = vst [vmem:[#allocation2 + $0x20] sm:$0xf] %v662
        %695 = vst [vmem:[#allocation2 + $0x24] sm:$0xf] %v663
        %696 = vst [vmem:[#allocation2 + $0x28] sm:$0xf] %v664
        %697 = vst [vmem:[#allocation2 + $0x2c] sm:$0xf] %v665
        %698 = vst [vmem:[#allocation2 + $0x30] sm:$0xf] %v666
        %699 = vst [vmem:[#allocation2 + $0x34] sm:$0xf] %v667
        %700 = vst [vmem:[#allocation2 + $0x38] sm:$0xf] %v668
        %701 = vst [vmem:[#allocation2 + $0x3c] sm:$0xf] %v669
      $region48: #{base_model_forward.1} parent=43 // pred_fallthru
        _
      %v702 = vld [vmem:[#allocation2] sm:$0xf]
      %v703 = vld [vmem:[#allocation2 + $0x4] sm:$0xf]
      %v704 = vld [vmem:[#allocation2 + $0x8] sm:$0xf]
      %v705 = vld [vmem:[#allocation2 + $0xc] sm:$0xf]
      %v706 = vld [vmem:[#allocation2 + $0x10] sm:$0xf]
      %v707 = vld [vmem:[#allocation2 + $0x14] sm:$0xf]
      %v708 = vld [vmem:[#allocation2 + $0x18] sm:$0xf]
      %v709 = vld [vmem:[#allocation2 + $0x1c] sm:$0xf]
      %v710 = vld [vmem:[#allocation2 + $0x20] sm:$0xf]
      %v711 = vld [vmem:[#allocation2 + $0x24] sm:$0xf]
      %v712 = vld [vmem:[#allocation2 + $0x28] sm:$0xf]
      %v713 = vld [vmem:[#allocation2 + $0x2c] sm:$0xf]
      %v714 = vld [vmem:[#allocation2 + $0x30] sm:$0xf]
      %v715 = vld [vmem:[#allocation2 + $0x34] sm:$0xf]
      %v716 = vld [vmem:[#allocation2 + $0x38] sm:$0xf]
      %v717 = vld [vmem:[#allocation2 + $0x3c] sm:$0xf]
      %v718 = vld [vmem:[%s351] sm:$0xf]
      %v719 = vld [vmem:[%s351 + $0x4] sm:$0xf]
      %v720 = vld [vmem:[%s4] sm:$0xf]
      %v721 = vld [vmem:[%s4 + $0x4] sm:$0xf]
      %v722 = vld [vmem:[%s4 + $0x8] sm:$0xf]
      %v723 = vld [vmem:[%s4 + $0xc] sm:$0xf]
      %v724 = vld [vmem:[%s4 + $0x10] sm:$0xf]
      %v725 = vld [vmem:[%s4 + $0x14] sm:$0xf]
      %v726 = vld [vmem:[%s4 + $0x18] sm:$0xf]
      %v727 = vld [vmem:[%s4 + $0x1c] sm:$0xf]
      %v728 = vld [vmem:[%s4 + $0x20] sm:$0xf]
      %v729 = vld [vmem:[%s4 + $0x24] sm:$0xf]
      %v730 = vld [vmem:[%s4 + $0x28] sm:$0xf]
      %v731 = vld [vmem:[%s4 + $0x2c] sm:$0xf]
      %v732 = vld [vmem:[%s4 + $0x30] sm:$0xf]
      %v733 = vld [vmem:[%s4 + $0x34] sm:$0xf]
      %v734 = vld [vmem:[%s4 + $0x38] sm:$0xf]
      %v735 = vld [vmem:[%s4 + $0x3c] sm:$0xf]
      %v738 = vunpack.c.l.b16 %v718
      %v739 = vunpack.c.l.b16 %v719
      %v740 = vpack.c.b16 %v739, %v738
      %v758 = vunpack.c.l.b16 %v720
      %v759 = vunpack.c.l.b16 %v721
      %v760 = vunpack.c.l.b16 %v722
      %v761 = vunpack.c.l.b16 %v723
      %v762 = vunpack.c.l.b16 %v724
      %v763 = vunpack.c.l.b16 %v725
      %v764 = vunpack.c.l.b16 %v726
      %v765 = vunpack.c.l.b16 %v727
      %v766 = vunpack.c.l.b16 %v728
      %v767 = vunpack.c.l.b16 %v729
      %v768 = vunpack.c.l.b16 %v730
      %v769 = vunpack.c.l.b16 %v731
      %v770 = vunpack.c.l.b16 %v732
      %v771 = vunpack.c.l.b16 %v733
      %v772 = vunpack.c.l.b16 %v734
      %v773 = vunpack.c.l.b16 %v735
      %v774 = vpack.c.b16 %v759, %v758
      %v775 = vpack.c.b16 %v761, %v760
      %v776 = vpack.c.b16 %v763, %v762
      %v777 = vpack.c.b16 %v765, %v764
      %v778 = vpack.c.b16 %v767, %v766
      %v779 = vpack.c.b16 %v769, %v768
      %v780 = vpack.c.b16 %v771, %v770
      %v781 = vpack.c.b16 %v773, %v772
      %790 = vmatprep.subr.bf16.mxu0 0
      %791 = vmatpush1.bf16.msra.mxu0 %v781
      %792 = vmatprep.subr.bf16.mxu0 0
      %793 = vmatpush1.bf16.msra.mxu0 %v780
      %794 = vmatprep.subr.bf16.mxu0 0
      %795 = vmatpush1.bf16.msra.mxu0 %v779
      %796 = vmatprep.subr.bf16.mxu0 0
      %797 = vmatpush1.bf16.msra.mxu0 %v778
      %798 = vmatprep.subr.bf16.mxu0 0
      %799 = vmatpush1.bf16.msra.mxu0 %v777
      %800 = vmatprep.subr.bf16.mxu0 0
      %801 = vmatpush1.bf16.msra.mxu0 %v776
      %802 = vmatprep.subr.bf16.mxu0 0
      %803 = vmatpush1.bf16.msra.mxu0 %v775
      %804 = vmatprep.subr.bf16.mxu0 0
      %805 = vmatpush1.bf16.msra.mxu0 %v774
      %806 = vmatprep.subr.bf16.mxu0 0
      %807 = vmatpush2.bf16.msra.mxu0 0
      %808 = vmatprep.subr.bf16.mxu0 0
      %809 = vmatpush2.bf16.msra.mxu0 0
      %810 = vmatprep.subr.bf16.mxu0 0
      %811 = vmatpush2.bf16.msra.mxu0 0
      %812 = vmatprep.subr.bf16.mxu0 0
      %813 = vmatpush2.bf16.msra.mxu0 0
      %814 = vmatprep.subr.bf16.mxu0 0
      %815 = vmatpush2.bf16.msra.mxu0 0
      %816 = vmatprep.subr.bf16.mxu0 0
      %817 = vmatpush2.bf16.msra.mxu0 0
      %818 = vmatprep.subr.bf16.mxu0 0
      %819 = vmatpush2.bf16.msra.mxu0 0
      %820 = vmatprep.subr.bf16.mxu0 0
      %821 = vmatpush2.bf16.msra.mxu0 0
      %822 = vmatprep.mubr.bf16.mxu0 0
      %823 = vmatmul.mubr.bf16.gmra.mxu0 %v740
      %v824 = vpop.f32.mrf.mxu0
      %v825 = vadd.f32 0.0, %v824
      %v826 = vpop.f32.mrf.mxu0
      %v827 = vpop.f32.mrf.mxu0
      %v828 = vadd.f32 0.0, %v827
      %v829 = vpop.f32.mrf.mxu0
      %830 = vdwg.mxu0
      %v831 = vtanh.pop %v825
      %v832 = vtanh.pop %v828
      %v833 = vmul.f32 %v831, 0.17677669
      %v834 = vmul.f32 %v832, 0.17677669
      %v835 = vpack.c.bf16 %v834, %v833
      %v836 = vld [vmem:[%s355] sm:$0x1]
      %v838 = vlaneseq
      %v839 = vshrl.u32 %v838, 7
      %v840 = vsub.s32 0, %v839
      %v841 = vrot.slane %v836, %v840
      %v859 = vunpack.c.l.b16 %v702
      %v860 = vunpack.c.l.b16 %v703
      %v861 = vunpack.c.l.b16 %v704
      %v862 = vunpack.c.l.b16 %v705
      %v863 = vunpack.c.l.b16 %v706
      %v864 = vunpack.c.l.b16 %v707
      %v865 = vunpack.c.l.b16 %v708
      %v866 = vunpack.c.l.b16 %v709
      %v867 = vunpack.c.l.b16 %v710
      %v868 = vunpack.c.l.b16 %v711
      %v869 = vunpack.c.l.b16 %v712
      %v870 = vunpack.c.l.b16 %v713
      %v871 = vunpack.c.l.b16 %v714
      %v872 = vunpack.c.l.b16 %v715
      %v873 = vunpack.c.l.b16 %v716
      %v874 = vunpack.c.l.b16 %v717
      %v875 = vpack.c.b16 %v860, %v859
      %v876 = vpack.c.b16 %v862, %v861
      %v877 = vpack.c.b16 %v864, %v863
      %v878 = vpack.c.b16 %v866, %v865
      %v879 = vpack.c.b16 %v868, %v867
      %v880 = vpack.c.b16 %v870, %v869
      %v881 = vpack.c.b16 %v872, %v871
      %v882 = vpack.c.b16 %v874, %v873
      %891 = vmatprep.subr.bf16.mxu0 0
      %892 = vmatpush1.bf16.xpose.msra.mxu0 %v882
      %893 = vmatprep.subr.bf16.mxu0 0
      %894 = vmatpush1.bf16.xpose.msra.mxu0 %v881
      %895 = vmatprep.subr.bf16.mxu0 0
      %896 = vmatpush1.bf16.xpose.msra.mxu0 %v880
      %897 = vmatprep.subr.bf16.mxu0 0
      %898 = vmatpush1.bf16.xpose.msra.mxu0 %v879
      %899 = vmatprep.subr.bf16.mxu0 0
      %900 = vmatpush1.bf16.xpose.msra.mxu0 %v878
      %901 = vmatprep.subr.bf16.mxu0 0
      %902 = vmatpush1.bf16.xpose.msra.mxu0 %v877
      %903 = vmatprep.subr.bf16.mxu0 0
      %904 = vmatpush1.bf16.xpose.msra.mxu0 %v876
      %905 = vmatprep.subr.bf16.mxu0 0
      %906 = vmatpush1.bf16.xpose.msra.mxu0 %v875
      %907 = vmatprep.subr.bf16.mxu0 0
      %908 = vmatpush2.bf16.xpose.msra.mxu0 0
      %909 = vmatprep.subr.bf16.mxu0 0
      %910 = vmatpush2.bf16.xpose.msra.mxu0 0
      %911 = vmatprep.subr.bf16.mxu0 0
      %912 = vmatpush2.bf16.xpose.msra.mxu0 0
      %913 = vmatprep.subr.bf16.mxu0 0
      %914 = vmatpush2.bf16.xpose.msra.mxu0 0
      %915 = vmatprep.subr.bf16.mxu0 0
      %916 = vmatpush2.bf16.xpose.msra.mxu0 0
      %917 = vmatprep.subr.bf16.mxu0 0
      %918 = vmatpush2.bf16.xpose.msra.mxu0 0
      %919 = vmatprep.subr.bf16.mxu0 0
      %920 = vmatpush2.bf16.xpose.msra.mxu0 0
      %921 = vmatprep.subr.bf16.mxu0 0
      %922 = vmatpush2.bf16.xpose.msra.mxu0 0
      %923 = vmatprep.mubr.bf16.mxu0 0
      %924 = vmatmul.mubr.bf16.gmra.mxu0 %v835
      %v925 = vpop.f32.mrf.mxu0
      %v926 = vadd.f32 %v841, %v925
      %v927 = vpop.f32.mrf.mxu0
      %v928 = vpop.f32.mrf.mxu0
      %v929 = vadd.f32 %v841, %v928
      %v930 = vpop.f32.mrf.mxu0
      %931 = vdwg.mxu0
      %932 = vmax.xlane.f32.xlu0 %v926
      %v933 = vpop.xlane.xlu0 %932
      %934 = vmax.xlane.f32.xlu0 %v929
      %v935 = vpop.xlane.xlu0 %934
      %v936 = vsub.f32 %v926, %v933
      %v937 = vsub.f32 %v929, %v935
      %v938 = vpack.c.bf16 %v937, %v936
      %v940 = vmul.bf16 %v938, 1069105081
      %v941 = vpow.bf16.pop %v940
      %v942 = vunpack.c.l.bf16 %v941
      %v943 = vunpack.c.h.bf16 %v941
      %944 = vadd.xlane.f32.xlu0 %v942
      %v945 = vpop.xlane.xlu0 %944
      %946 = vadd.xlane.f32.xlu0 %v943
      %v947 = vpop.xlane.xlu0 %946
      %v948 = vrcp.pop %v945
      %v949 = vrcp.pop %v947
      %v950 = vpack.c.bf16 %v949, %v948
      %v951 = vmul.bf16 %v941, %v950
      %952 = vmatprep.subr.bf16.mxu0 0
      %953 = vmatpush1.bf16.msra.mxu0 %v882
      %954 = vmatprep.subr.bf16.mxu0 0
      %955 = vmatpush1.bf16.msra.mxu0 %v881
      %956 = vmatprep.subr.bf16.mxu0 0
      %957 = vmatpush1.bf16.msra.mxu0 %v880
      %958 = vmatprep.subr.bf16.mxu0 0
      %959 = vmatpush1.bf16.msra.mxu0 %v879
      %960 = vmatprep.subr.bf16.mxu0 0
      %961 = vmatpush1.bf16.msra.mxu0 %v878
      %962 = vmatprep.subr.bf16.mxu0 0
      %963 = vmatpush1.bf16.msra.mxu0 %v877
      %964 = vmatprep.subr.bf16.mxu0 0
      %965 = vmatpush1.bf16.msra.mxu0 %v876
      %966 = vmatprep.subr.bf16.mxu0 0
      %967 = vmatpush1.bf16.msra.mxu0 %v875
      %968 = vmatprep.subr.bf16.mxu0 0
      %969 = vmatpush2.bf16.msra.mxu0 0
      %970 = vmatprep.subr.bf16.mxu0 0
      %971 = vmatpush2.bf16.msra.mxu0 0
      %972 = vmatprep.subr.bf16.mxu0 0
      %973 = vmatpush2.bf16.msra.mxu0 0
      %974 = vmatprep.subr.bf16.mxu0 0
      %975 = vmatpush2.bf16.msra.mxu0 0
      %976 = vmatprep.subr.bf16.mxu0 0
      %977 = vmatpush2.bf16.msra.mxu0 0
      %978 = vmatprep.subr.bf16.mxu0 0
      %979 = vmatpush2.bf16.msra.mxu0 0
      %980 = vmatprep.subr.bf16.mxu0 0
      %981 = vmatpush2.bf16.msra.mxu0 0
      %982 = vmatprep.subr.bf16.mxu0 0
      %983 = vmatpush2.bf16.msra.mxu0 0
      %984 = vmatprep.mubr.bf16.mxu0 0
      %985 = vmatmul.mubr.bf16.gmra.mxu0 %v951
      %v986 = vpop.f32.mrf.mxu0
      %v987 = vadd.f32 0.0, %v986
      %v988 = vpop.f32.mrf.mxu0
      %v989 = vpop.f32.mrf.mxu0
      %v990 = vadd.f32 0.0, %v989
      %v991 = vpop.f32.mrf.mxu0
      %992 = vdwg.mxu0
      %v993 = vpack.c.bf16 %v990, %v987
      %v994 = vld [vmem:[%s5] sm:$0xf]
      %v995 = vld [vmem:[%s5 + $0x4] sm:$0xf]
      %v996 = vld [vmem:[%s5 + $0x8] sm:$0xf]
      %v997 = vld [vmem:[%s5 + $0xc] sm:$0xf]
      %v998 = vld [vmem:[%s5 + $0x10] sm:$0xf]
      %v999 = vld [vmem:[%s5 + $0x14] sm:$0xf]
      %v1000 = vld [vmem:[%s5 + $0x18] sm:$0xf]
      %v1001 = vld [vmem:[%s5 + $0x1c] sm:$0xf]
      %v1002 = vld [vmem:[%s5 + $0x20] sm:$0xf]
      %v1003 = vld [vmem:[%s5 + $0x24] sm:$0xf]
      %v1004 = vld [vmem:[%s5 + $0x28] sm:$0xf]
      %v1005 = vld [vmem:[%s5 + $0x2c] sm:$0xf]
      %v1006 = vld [vmem:[%s5 + $0x30] sm:$0xf]
      %v1007 = vld [vmem:[%s5 + $0x34] sm:$0xf]
      %v1008 = vld [vmem:[%s5 + $0x38] sm:$0xf]
      %v1009 = vld [vmem:[%s5 + $0x3c] sm:$0xf]
      %v1026 = vunpack.c.l.b16 %v994
      %v1027 = vunpack.c.l.b16 %v995
      %v1028 = vunpack.c.l.b16 %v996
      %v1029 = vunpack.c.l.b16 %v997
      %v1030 = vunpack.c.l.b16 %v998
      %v1031 = vunpack.c.l.b16 %v999
      %v1032 = vunpack.c.l.b16 %v1000
      %v1033 = vunpack.c.l.b16 %v1001
      %v1034 = vunpack.c.l.b16 %v1002
      %v1035 = vunpack.c.l.b16 %v1003
      %v1036 = vunpack.c.l.b16 %v1004
      %v1037 = vunpack.c.l.b16 %v1005
      %v1038 = vunpack.c.l.b16 %v1006
      %v1039 = vunpack.c.l.b16 %v1007
      %v1040 = vunpack.c.l.b16 %v1008
      %v1041 = vunpack.c.l.b16 %v1009
      %v1042 = vpack.c.b16 %v1027, %v1026
      %v1043 = vpack.c.b16 %v1029, %v1028
      %v1044 = vpack.c.b16 %v1031, %v1030
      %v1045 = vpack.c.b16 %v1033, %v1032
      %v1046 = vpack.c.b16 %v1035, %v1034
      %v1047 = vpack.c.b16 %v1037, %v1036
      %v1048 = vpack.c.b16 %v1039, %v1038
      %v1049 = vpack.c.b16 %v1041, %v1040
      %1058 = vmatprep.subr.bf16.mxu0 0
      %1059 = vmatpush1.bf16.msra.mxu0 %v1049
      %1060 = vmatprep.subr.bf16.mxu0 0
      %1061 = vmatpush1.bf16.msra.mxu0 %v1048
      %1062 = vmatprep.subr.bf16.mxu0 0
      %1063 = vmatpush1.bf16.msra.mxu0 %v1047
      %1064 = vmatprep.subr.bf16.mxu0 0
      %1065 = vmatpush1.bf16.msra.mxu0 %v1046
      %1066 = vmatprep.subr.bf16.mxu0 0
      %1067 = vmatpush1.bf16.msra.mxu0 %v1045
      %1068 = vmatprep.subr.bf16.mxu0 0
      %1069 = vmatpush1.bf16.msra.mxu0 %v1044
      %1070 = vmatprep.subr.bf16.mxu0 0
      %1071 = vmatpush1.bf16.msra.mxu0 %v1043
      %1072 = vmatprep.subr.bf16.mxu0 0
      %1073 = vmatpush1.bf16.msra.mxu0 %v1042
      %1074 = vmatprep.subr.bf16.mxu0 0
      %1075 = vmatpush2.bf16.msra.mxu0 0
      %1076 = vmatprep.subr.bf16.mxu0 0
      %1077 = vmatpush2.bf16.msra.mxu0 0
      %1078 = vmatprep.subr.bf16.mxu0 0
      %1079 = vmatpush2.bf16.msra.mxu0 0
      %1080 = vmatprep.subr.bf16.mxu0 0
      %1081 = vmatpush2.bf16.msra.mxu0 0
      %1082 = vmatprep.subr.bf16.mxu0 0
      %1083 = vmatpush2.bf16.msra.mxu0 0
      %1084 = vmatprep.subr.bf16.mxu0 0
      %1085 = vmatpush2.bf16.msra.mxu0 0
      %1086 = vmatprep.subr.bf16.mxu0 0
      %1087 = vmatpush2.bf16.msra.mxu0 0
      %1088 = vmatprep.subr.bf16.mxu0 0
      %1089 = vmatpush2.bf16.msra.mxu0 0
      %1090 = vmatprep.mubr.bf16.mxu0 0
      %1091 = vmatmul.mubr.bf16.gmra.mxu0 %v993
      %v1092 = vpop.f32.mrf.mxu0
      %v1093 = vadd.f32 %v831, %v1092
      %v1094 = vpop.f32.mrf.mxu0
      %v1095 = vpop.f32.mrf.mxu0
      %v1096 = vadd.f32 %v832, %v1095
      %v1097 = vpop.f32.mrf.mxu0
      %1098 = vdwg.mxu0
      %v1099 = vtanh.pop %v1093
      %v1100 = vtanh.pop %v1096
      %v1101 = vpack.c.bf16 %v1100, %v1099
      %v1103 = vunpack.c.l.b16 %v1101
      %v1104 = vunpack.c.h.b16 %v1101
      %v1105 = vpack.c.b16 %v1103, %v1103
      %v1106 = vpack.c.b16 %v1104, %v1104
      %1109 = vst [vmem:[%s364] sm:$0xf] %v1105
      %1110 = vst [vmem:[%s364 + $0x4] sm:$0xf] %v1106
      %v1112 = vunpack.c.l.b16 %v951
      %v1113 = vunpack.c.h.b16 %v951
      %v1114 = vpack.c.b16 %v1112, %v1112
      %v1115 = vpack.c.b16 %v1113, %v1113
      %1118 = vst [vmem:[%s374] sm:$0xf] %v1114
      %1119 = vst [vmem:[%s374 + $0x4] sm:$0xf] %v1115
      %s1120 = smul.u32 2, %s24
      %p1121 = scmp.lt.s32.totalorder %s23, 1
      %s1122 = scalar_select %p1121, %s23, 1
      %p1123 = scmp.lt.s32.totalorder %s1120, 1
      %s1124 = scalar_select %p1123, %s1120, 1
      %s1125 = smul.addr %s1122, 2
      %s1126 = sadd.s32 %s1124, %s1125
      %s1127 = smul.addr %s1126, 4
      %s1128 = scalar_lea.vmem %s6, %s1127
      %s1129 = smul.u32 2, %s24
      %p1130 = scmp.lt.s32.totalorder %s23, 1
      %s1131 = scalar_select %p1130, %s23, 1
      %p1132 = scmp.lt.s32.totalorder %s1129, 1
      %s1133 = scalar_select %p1132, %s1129, 1
      %s1134 = smul.addr %s1131, 2
      %s1135 = sadd.s32 %s1133, %s1134
      %s1136 = smul.addr %s1135, 4
      %s1137 = scalar_lea.vmem %s7, %s1136
      // Predicated region
      $region49: #{base_model_forward.1} parent=43 // pred_check
        %p1138 = pneg %p194
      $region50: #{base_model_forward.1} parent=43 // pred_check_branch
        %1140 = sbr.rel (%p1138) target = $region52
      $region51: #{base_model_forward.1} parent=43 // pred_region
        %s1141 = smul.u32 2, %s24
      $region52: #{base_model_forward.1} parent=43 // pred_fallthru
        _
      // Predicated region
      $region53: #{base_model_forward.1} parent=43 // pred_check
        %p1142 = pneg %p222
      $region54: #{base_model_forward.1} parent=43 // pred_check_branch
        %1144 = sbr.rel (%p1142) target = $region56
      $region55: #{base_model_forward.1} parent=43 // pred_region
        %s1145 = smul.u32 2, %s24
      $region56: #{base_model_forward.1} parent=43 // pred_fallthru
        _
    $region44: #{base_model_forward.1} parent=5 // pred_fallthru
      _
    %p1146 = scmp.le.s32.totalorder 2, %s14
    // Predicated region
    $region57: #{base_model_forward.1} parent=5 // pred_check
      %p1147 = pneg %p1146
    $region58: #{base_model_forward.1} parent=5 // pred_check_branch
      %1149 = sbr.rel (%p1147) target = $region60
    $region59: #{base_model_forward.1} parent=5 // pred_region
      %s1150 = ssub.s32 %s14, 2
      // Predicated region
      $region61: #{base_model_forward.1} parent=59 // pred_check
        %p1151 = pneg %p200
      $region62: #{base_model_forward.1} parent=59 // pred_check_branch
        %1153 = sbr.rel (%p1151) target = $region64
      $region63: #{base_model_forward.1} parent=59 // pred_region
        %s1154 = smul.u32 2, %s26
        %p1155 = scmp.lt.s32.totalorder %s25, 1
        %s1156 = scalar_select %p1155, %s25, 1
        %p1157 = scmp.lt.s32.totalorder %s1154, 1
        %s1158 = scalar_select %p1157, %s1154, 1
        %s1159 = smul.addr %s1156, 2
        %s1160 = sadd.s32 %s1158, %s1159
        %s1161 = smul.addr %s1160, 4
        %s1162 = scalar_lea.vmem %s6, %s1161
      $region64: #{base_model_forward.1} parent=59 // pred_fallthru
        _
      // Predicated region
      $region65: #{base_model_forward.1} parent=59 // pred_check
        %p1163 = pneg %p228
      $region66: #{base_model_forward.1} parent=59 // pred_check_branch
        %1165 = sbr.rel (%p1163) target = $region68
      $region67: #{base_model_forward.1} parent=59 // pred_region
        %s1166 = smul.u32 2, %s26
        %p1167 = scmp.lt.s32.totalorder %s25, 1
        %s1168 = scalar_select %p1167, %s25, 1
        %p1169 = scmp.lt.s32.totalorder %s1166, 1
        %s1170 = scalar_select %p1169, %s1166, 1
        %s1171 = smul.addr %s1168, 2
        %s1172 = sadd.s32 %s1170, %s1171
        %s1173 = smul.addr %s1172, 4
        %s1174 = scalar_lea.vmem %s7, %s1173
      $region68: #{base_model_forward.1} parent=59 // pred_fallthru
        _
    $region60: #{base_model_forward.1} parent=5 // pred_fallthru
      _
  $region6: #{base_model_forward.1} parent=0 // loop_footer
    %s18 = sadd.s32 1, %s14
  $region7: #{base_model_forward.1} parent=0 // loop_footer_branch
    %13 = sbr.rel target = $region3
  $region8: #{base_model_forward.1} parent=0 // loop_exit
    _

</llo_original>
